<compile_context>
chip_gen: v6e
topology: v6e:2x2x1
jax: 0.10.0
libtpu: 0.0.40
codegen_flags: <defaults>
</compile_context>

<pallas_src>
import jax
import jax.numpy as jnp
import numpy as np
from jax.experimental import pallas as pl
from jax.experimental.pallas import tpu as pltpu

SUBLANES = 8            # sublane rows per vreg chunk
LANES = 128             # lane width
TARGET_BLOCK_ROWS = 64  # 64 rows * 128 lanes = 8192 samples per grid step


def homography_expm_kernel(v_ref, h_ref):
    """Batched 3x3 matrix exponential (9-term Taylor), pure VPU.

    v_ref: (8, BR, 128) f32 -- coefficient k of sample (row, lane) at
           v_ref[k, row, lane]
    h_ref: (9, BR, 128) f32 -- entry (r, c) of sample (row, lane) at
           h_ref[3*r + c, row, lane]
    """
    n_chunks = v_ref.shape[1] // SUBLANES  # static

    def chunk_body(c, carry):
        r0 = pl.multiple_of(c * SUBLANES, SUBLANES)
        rows = pl.ds(r0, SUBLANES)

        # Each coefficient is a full (8, 128) tile: 1024 samples per vreg.
        v0, v1, v2, v3, v4, v5, v6, v7 = (
            v_ref[k, rows, :] for k in range(8))

        # Closed form of C = sum_k v_k * B_k for the fixed sparse sl(3) basis.
        C = [[v4,        v2,       v0],
             [v3,   -v4 - v5,      v1],
             [v6,        v7,       v5]]

        # Fold the structurally trivial first Taylor term: A = C, H = I + C.
        A = [[C[r][cc] for cc in range(3)] for r in range(3)]
        H = [[(C[r][cc] + 1.0) if r == cc else C[r][cc] for cc in range(3)]
             for r in range(3)]

        # Unrolled Taylor recurrence, i = 2..9:
        #   A <- (A * 1/i) @ C ;  H <- H + A
        # The 3x3 matmul is expanded into per-entry multiply-adds over the
        # batch tile (VPU only, no MXU); 1/i is a trace-time constant.
        for i in range(2, 10):
            inv_i = 1.0 / float(i)
            As = [[A[r][cc] * inv_i for cc in range(3)] for r in range(3)]
            A = [[As[r][0] * C[0][cc] + As[r][1] * C[1][cc]
                  + As[r][2] * C[2][cc]
                  for cc in range(3)] for r in range(3)]
            H = [[H[r][cc] + A[r][cc] for cc in range(3)] for r in range(3)]

        # Entry-major, full-tile (8, 128) unmasked stores.
        for r in range(3):
            for cc in range(3):
                h_ref[3 * r + cc, rows, :] = H[r][cc]
        return carry

    jax.lax.fori_loop(0, n_chunks, chunk_body, None, unroll=True)


def _round_up(x, m):
    return -(-x // m) * m


def homography_net_forward_batched(v_batch):
    """v_batch: (N, 8) f32 coefficient vectors -> (N, 3, 3) f32 homographies."""
    v_batch = jnp.asarray(v_batch, jnp.float32)
    n = v_batch.shape[0]

    # Samples packed (row, lane): sample i -> (i // 128, i % 128).
    n_rows = _round_up(max(-(-n // LANES), 1), SUBLANES)
    block_rows = min(TARGET_BLOCK_ROWS, n_rows)
    # Keep >= 2 "parallel" grid steps when the batch allows, so a v7x megacore
    # can split the work across its two TensorCores.
    if n_rows > SUBLANES and n_rows // block_rows < 2:
        block_rows = max(SUBLANES, (n_rows // (2 * SUBLANES)) * SUBLANES)
    n_rows = _round_up(n_rows, block_rows)
    n_pad = n_rows * LANES

    # Zero padding is harmless: padded samples produce the identity and are
    # sliced away below.
    # TODO(synk): callers that already keep v in (8, N) layout could feed it
    # straight in and skip this pad/transpose relayout pass entirely.
    v_p = (jnp.zeros((8, n_pad), jnp.float32)
           .at[:, :n].set(v_batch.T)
           .reshape(8, n_rows, LANES))

    out = pl.pallas_call(
        homography_expm_kernel,
        out_shape=jax.ShapeDtypeStruct((9, n_rows, LANES), jnp.float32),
        grid_spec=pltpu.PrefetchScalarGridSpec(
            num_scalar_prefetch=0,
            grid=(n_rows // block_rows,),
            in_specs=[pl.BlockSpec((8, block_rows, LANES),
                                   lambda i: (0, i, 0))],
            out_specs=pl.BlockSpec((9, block_rows, LANES),
                                   lambda i: (0, i, 0)),
        ),
        compiler_params=pltpu.CompilerParams(
            dimension_semantics=("parallel",)),
    )(v_p)

    # (9, n_rows, 128) -> (N, 3, 3); entry index of `out` is 3*r + c.
    return out.reshape(9, n_pad)[:, :n].T.reshape(n, 3, 3)


def homography_net_forward(v):
    """Module-faithful forward: v is the (8, 1, 1) learnable parameter;
    returns the single 3x3 homography H = expm(sum_k v_k * B_k)."""
    return homography_net_forward_batched(jnp.reshape(v, (1, 8)))[0]


# ------------------------- pure-JAX reference ---------------------------- #

def make_generator_basis():
    """Fixed buffer B exactly as built in HomographyNet.__init__."""
    B = np.zeros((8, 3, 3), np.float32)
    B[0, 0, 2] = 1.0
    B[1, 1, 2] = 1.0
    B[2, 0, 1] = 1.0
    B[3, 1, 0] = 1.0
    B[4, 0, 0], B[4, 1, 1] = 1.0, -1.0
    B[5, 1, 1], B[5, 2, 2] = -1.0, 1.0
    B[6, 2, 0] = 1.0
    B[7, 2, 1] = 1.0
    return jnp.asarray(B)


def reference_forward(v8):
    """Pure-JAX mirror of the PyTorch MatrixExp for one (8,) coefficient vec."""
    B = make_generator_basis()
    C = jnp.sum(B * v8[:, None, None], axis=0)
    A = jnp.eye(3, dtype=jnp.float32)
    H = jnp.eye(3, dtype=jnp.float32)
    for i in range(1, 10):
        A = jnp.dot(A / float(i), C)
        H = H + A
    return H


if __name__ == "__main__":
    key = jax.random.PRNGKey(0)

    # Module-faithful single forward: learnable v has shape (8, 1, 1).
    # (PyTorch initializes it to zeros -> H = I; use small random values so
    #  the Taylor series is actually exercised.)
    v_param = 0.1 * jax.random.normal(key, (8, 1, 1), dtype=jnp.float32)
    H = jax.block_until_ready(homography_net_forward(v_param))
    H_ref = reference_forward(jnp.reshape(v_param, (8,)))
    np.testing.assert_allclose(np.asarray(H), np.asarray(H_ref),
                               rtol=1e-5, atol=1e-5)

    # Batched throughput path: N independent coefficient vectors per call.
    n = 8
    v_batch = 0.1 * jax.random.normal(jax.random.PRNGKey(0), (n, 8),
                                      dtype=jnp.float32)
    H_batch = jax.block_until_ready(homography_net_forward_batched(v_batch))
    H_batch_ref = jnp.stack([reference_forward(v_batch[i]) for i in range(n)])
    np.testing.assert_allclose(np.asarray(H_batch), np.asarray(H_batch_ref),
                               rtol=1e-5, atol=1e-5)

    print("KERNEL_OK")
</pallas_src>

<mosaic_0001>
module attributes {stable_mosaic.version = 11 : i64} {
  func.func @homography_expm_kernel(%arg0: i32, %arg1: memref<8x8x128xf32, #tpu.memory_space<vmem>>, %arg2: memref<9x8x128xf32, #tpu.memory_space<vmem>>) attributes {dimension_semantics = [#tpu.dimension_semantics<parallel>], iteration_bounds = array<i64: 1>, scalar_prefetch = 0 : i64, scratch_operands = 0 : i64, tpu.core_type = #tpu.core_type<tc>, window_params = [{transform_indices = @transform_0, window_bounds = array<i64: 8, 8, 128>}, {transform_indices = @transform_1, window_bounds = array<i64: 9, 8, 128>}]} {
    %c0_i32 = arith.constant 0 : i32
    %c8_i32 = arith.constant 8 : i32
    %0 = arith.muli %c0_i32, %c8_i32 : i32
    %1 = tpu.assume_multiple %0, 8 : i32
    %c0 = arith.constant 0 : index
    %2 = arith.index_cast %1 : i32 to index
    %c0_0 = arith.constant 0 : index
    %3 = vector.load %arg1[%c0, %2, %c0_0] : memref<8x8x128xf32, #tpu.memory_space<vmem>>, vector<1x8x128xf32>
    %4 = vector.shape_cast %3 : vector<1x8x128xf32> to vector<8x128xf32>
    %c1 = arith.constant 1 : index
    %5 = arith.index_cast %1 : i32 to index
    %c0_1 = arith.constant 0 : index
    %6 = vector.load %arg1[%c1, %5, %c0_1] : memref<8x8x128xf32, #tpu.memory_space<vmem>>, vector<1x8x128xf32>
    %7 = vector.shape_cast %6 : vector<1x8x128xf32> to vector<8x128xf32>
    %c2 = arith.constant 2 : index
    %8 = arith.index_cast %1 : i32 to index
    %c0_2 = arith.constant 0 : index
    %9 = vector.load %arg1[%c2, %8, %c0_2] : memref<8x8x128xf32, #tpu.memory_space<vmem>>, vector<1x8x128xf32>
    %10 = vector.shape_cast %9 : vector<1x8x128xf32> to vector<8x128xf32>
    %c3 = arith.constant 3 : index
    %11 = arith.index_cast %1 : i32 to index
    %c0_3 = arith.constant 0 : index
    %12 = vector.load %arg1[%c3, %11, %c0_3] : memref<8x8x128xf32, #tpu.memory_space<vmem>>, vector<1x8x128xf32>
    %13 = vector.shape_cast %12 : vector<1x8x128xf32> to vector<8x128xf32>
    %c4 = arith.constant 4 : index
    %14 = arith.index_cast %1 : i32 to index
    %c0_4 = arith.constant 0 : index
    %15 = vector.load %arg1[%c4, %14, %c0_4] : memref<8x8x128xf32, #tpu.memory_space<vmem>>, vector<1x8x128xf32>
    %16 = vector.shape_cast %15 : vector<1x8x128xf32> to vector<8x128xf32>
    %c5 = arith.constant 5 : index
    %17 = arith.index_cast %1 : i32 to index
    %c0_5 = arith.constant 0 : index
    %18 = vector.load %arg1[%c5, %17, %c0_5] : memref<8x8x128xf32, #tpu.memory_space<vmem>>, vector<1x8x128xf32>
    %19 = vector.shape_cast %18 : vector<1x8x128xf32> to vector<8x128xf32>
    %c6 = arith.constant 6 : index
    %20 = arith.index_cast %1 : i32 to index
    %c0_6 = arith.constant 0 : index
    %21 = vector.load %arg1[%c6, %20, %c0_6] : memref<8x8x128xf32, #tpu.memory_space<vmem>>, vector<1x8x128xf32>
    %22 = vector.shape_cast %21 : vector<1x8x128xf32> to vector<8x128xf32>
    %c7 = arith.constant 7 : index
    %23 = arith.index_cast %1 : i32 to index
    %c0_7 = arith.constant 0 : index
    %24 = vector.load %arg1[%c7, %23, %c0_7] : memref<8x8x128xf32, #tpu.memory_space<vmem>>, vector<1x8x128xf32>
    %25 = vector.shape_cast %24 : vector<1x8x128xf32> to vector<8x128xf32>
    %cst = arith.constant 0.000000e+00 : f32
    %26 = vector.broadcast %cst : f32 to vector<8x128xf32>
    %27 = arith.subf %26, %16 : vector<8x128xf32>
    %28 = arith.subf %27, %19 : vector<8x128xf32>
    %cst_8 = arith.constant 1.000000e+00 : f32
    %29 = vector.broadcast %cst_8 : f32 to vector<8x128xf32>
    %30 = arith.addf %16, %29 : vector<8x128xf32>
    %cst_9 = arith.constant 1.000000e+00 : f32
    %31 = vector.broadcast %cst_9 : f32 to vector<8x128xf32>
    %32 = arith.addf %28, %31 : vector<8x128xf32>
    %cst_10 = arith.constant 1.000000e+00 : f32
    %33 = vector.broadcast %cst_10 : f32 to vector<8x128xf32>
    %34 = arith.addf %19, %33 : vector<8x128xf32>
    %cst_11 = arith.constant 5.000000e-01 : f32
    %35 = vector.broadcast %cst_11 : f32 to vector<8x128xf32>
    %36 = arith.mulf %16, %35 : vector<8x128xf32>
    %cst_12 = arith.constant 5.000000e-01 : f32
    %37 = vector.broadcast %cst_12 : f32 to vector<8x128xf32>
    %38 = arith.mulf %10, %37 : vector<8x128xf32>
    %cst_13 = arith.constant 5.000000e-01 : f32
    %39 = vector.broadcast %cst_13 : f32 to vector<8x128xf32>
    %40 = arith.mulf %4, %39 : vector<8x128xf32>
    %cst_14 = arith.constant 5.000000e-01 : f32
    %41 = vector.broadcast %cst_14 : f32 to vector<8x128xf32>
    %42 = arith.mulf %13, %41 : vector<8x128xf32>
    %cst_15 = arith.constant 5.000000e-01 : f32
    %43 = vector.broadcast %cst_15 : f32 to vector<8x128xf32>
    %44 = arith.mulf %28, %43 : vector<8x128xf32>
    %cst_16 = arith.constant 5.000000e-01 : f32
    %45 = vector.broadcast %cst_16 : f32 to vector<8x128xf32>
    %46 = arith.mulf %7, %45 : vector<8x128xf32>
    %cst_17 = arith.constant 5.000000e-01 : f32
    %47 = vector.broadcast %cst_17 : f32 to vector<8x128xf32>
    %48 = arith.mulf %22, %47 : vector<8x128xf32>
    %cst_18 = arith.constant 5.000000e-01 : f32
    %49 = vector.broadcast %cst_18 : f32 to vector<8x128xf32>
    %50 = arith.mulf %25, %49 : vector<8x128xf32>
    %cst_19 = arith.constant 5.000000e-01 : f32
    %51 = vector.broadcast %cst_19 : f32 to vector<8x128xf32>
    %52 = arith.mulf %19, %51 : vector<8x128xf32>
    %53 = arith.mulf %36, %16 : vector<8x128xf32>
    %54 = arith.mulf %38, %13 : vector<8x128xf32>
    %55 = arith.addf %53, %54 : vector<8x128xf32>
    %56 = arith.mulf %40, %22 : vector<8x128xf32>
    %57 = arith.addf %55, %56 : vector<8x128xf32>
    %58 = arith.mulf %36, %10 : vector<8x128xf32>
    %59 = arith.mulf %38, %28 : vector<8x128xf32>
    %60 = arith.addf %58, %59 : vector<8x128xf32>
    %61 = arith.mulf %40, %25 : vector<8x128xf32>
    %62 = arith.addf %60, %61 : vector<8x128xf32>
    %63 = arith.mulf %36, %4 : vector<8x128xf32>
    %64 = arith.mulf %38, %7 : vector<8x128xf32>
    %65 = arith.addf %63, %64 : vector<8x128xf32>
    %66 = arith.mulf %40, %19 : vector<8x128xf32>
    %67 = arith.addf %65, %66 : vector<8x128xf32>
    %68 = arith.mulf %42, %16 : vector<8x128xf32>
    %69 = arith.mulf %44, %13 : vector<8x128xf32>
    %70 = arith.addf %68, %69 : vector<8x128xf32>
    %71 = arith.mulf %46, %22 : vector<8x128xf32>
    %72 = arith.addf %70, %71 : vector<8x128xf32>
    %73 = arith.mulf %42, %10 : vector<8x128xf32>
    %74 = arith.mulf %44, %28 : vector<8x128xf32>
    %75 = arith.addf %73, %74 : vector<8x128xf32>
    %76 = arith.mulf %46, %25 : vector<8x128xf32>
    %77 = arith.addf %75, %76 : vector<8x128xf32>
    %78 = arith.mulf %42, %4 : vector<8x128xf32>
    %79 = arith.mulf %44, %7 : vector<8x128xf32>
    %80 = arith.addf %78, %79 : vector<8x128xf32>
    %81 = arith.mulf %46, %19 : vector<8x128xf32>
    %82 = arith.addf %80, %81 : vector<8x128xf32>
    %83 = arith.mulf %48, %16 : vector<8x128xf32>
    %84 = arith.mulf %50, %13 : vector<8x128xf32>
    %85 = arith.addf %83, %84 : vector<8x128xf32>
    %86 = arith.mulf %52, %22 : vector<8x128xf32>
    %87 = arith.addf %85, %86 : vector<8x128xf32>
    %88 = arith.mulf %48, %10 : vector<8x128xf32>
    %89 = arith.mulf %50, %28 : vector<8x128xf32>
    %90 = arith.addf %88, %89 : vector<8x128xf32>
    %91 = arith.mulf %52, %25 : vector<8x128xf32>
    %92 = arith.addf %90, %91 : vector<8x128xf32>
    %93 = arith.mulf %48, %4 : vector<8x128xf32>
    %94 = arith.mulf %50, %7 : vector<8x128xf32>
    %95 = arith.addf %93, %94 : vector<8x128xf32>
    %96 = arith.mulf %52, %19 : vector<8x128xf32>
    %97 = arith.addf %95, %96 : vector<8x128xf32>
    %98 = arith.addf %30, %57 : vector<8x128xf32>
    %99 = arith.addf %10, %62 : vector<8x128xf32>
    %100 = arith.addf %4, %67 : vector<8x128xf32>
    %101 = arith.addf %13, %72 : vector<8x128xf32>
    %102 = arith.addf %32, %77 : vector<8x128xf32>
    %103 = arith.addf %7, %82 : vector<8x128xf32>
    %104 = arith.addf %22, %87 : vector<8x128xf32>
    %105 = arith.addf %25, %92 : vector<8x128xf32>
    %106 = arith.addf %34, %97 : vector<8x128xf32>
    %cst_20 = arith.constant 0.333333343 : f32
    %107 = vector.broadcast %cst_20 : f32 to vector<8x128xf32>
    %108 = arith.mulf %57, %107 : vector<8x128xf32>
    %cst_21 = arith.constant 0.333333343 : f32
    %109 = vector.broadcast %cst_21 : f32 to vector<8x128xf32>
    %110 = arith.mulf %62, %109 : vector<8x128xf32>
    %cst_22 = arith.constant 0.333333343 : f32
    %111 = vector.broadcast %cst_22 : f32 to vector<8x128xf32>
    %112 = arith.mulf %67, %111 : vector<8x128xf32>
    %cst_23 = arith.constant 0.333333343 : f32
    %113 = vector.broadcast %cst_23 : f32 to vector<8x128xf32>
    %114 = arith.mulf %72, %113 : vector<8x128xf32>
    %cst_24 = arith.constant 0.333333343 : f32
    %115 = vector.broadcast %cst_24 : f32 to vector<8x128xf32>
    %116 = arith.mulf %77, %115 : vector<8x128xf32>
    %cst_25 = arith.constant 0.333333343 : f32
    %117 = vector.broadcast %cst_25 : f32 to vector<8x128xf32>
    %118 = arith.mulf %82, %117 : vector<8x128xf32>
    %cst_26 = arith.constant 0.333333343 : f32
    %119 = vector.broadcast %cst_26 : f32 to vector<8x128xf32>
    %120 = arith.mulf %87, %119 : vector<8x128xf32>
    %cst_27 = arith.constant 0.333333343 : f32
    %121 = vector.broadcast %cst_27 : f32 to vector<8x128xf32>
    %122 = arith.mulf %92, %121 : vector<8x128xf32>
    %cst_28 = arith.constant 0.333333343 : f32
    %123 = vector.broadcast %cst_28 : f32 to vector<8x128xf32>
    %124 = arith.mulf %97, %123 : vector<8x128xf32>
    %125 = arith.mulf %108, %16 : vector<8x128xf32>
    %126 = arith.mulf %110, %13 : vector<8x128xf32>
    %127 = arith.addf %125, %126 : vector<8x128xf32>
    %128 = arith.mulf %112, %22 : vector<8x128xf32>
    %129 = arith.addf %127, %128 : vector<8x128xf32>
    %130 = arith.mulf %108, %10 : vector<8x128xf32>
    %131 = arith.mulf %110, %28 : vector<8x128xf32>
    %132 = arith.addf %130, %131 : vector<8x128xf32>
    %133 = arith.mulf %112, %25 : vector<8x128xf32>
    %134 = arith.addf %132, %133 : vector<8x128xf32>
    %135 = arith.mulf %108, %4 : vector<8x128xf32>
    %136 = arith.mulf %110, %7 : vector<8x128xf32>
    %137 = arith.addf %135, %136 : vector<8x128xf32>
    %138 = arith.mulf %112, %19 : vector<8x128xf32>
    %139 = arith.addf %137, %138 : vector<8x128xf32>
    %140 = arith.mulf %114, %16 : vector<8x128xf32>
    %141 = arith.mulf %116, %13 : vector<8x128xf32>
    %142 = arith.addf %140, %141 : vector<8x128xf32>
    %143 = arith.mulf %118, %22 : vector<8x128xf32>
    %144 = arith.addf %142, %143 : vector<8x128xf32>
    %145 = arith.mulf %114, %10 : vector<8x128xf32>
    %146 = arith.mulf %116, %28 : vector<8x128xf32>
    %147 = arith.addf %145, %146 : vector<8x128xf32>
    %148 = arith.mulf %118, %25 : vector<8x128xf32>
    %149 = arith.addf %147, %148 : vector<8x128xf32>
    %150 = arith.mulf %114, %4 : vector<8x128xf32>
    %151 = arith.mulf %116, %7 : vector<8x128xf32>
    %152 = arith.addf %150, %151 : vector<8x128xf32>
    %153 = arith.mulf %118, %19 : vector<8x128xf32>
    %154 = arith.addf %152, %153 : vector<8x128xf32>
    %155 = arith.mulf %120, %16 : vector<8x128xf32>
    %156 = arith.mulf %122, %13 : vector<8x128xf32>
    %157 = arith.addf %155, %156 : vector<8x128xf32>
    %158 = arith.mulf %124, %22 : vector<8x128xf32>
    %159 = arith.addf %157, %158 : vector<8x128xf32>
    %160 = arith.mulf %120, %10 : vector<8x128xf32>
    %161 = arith.mulf %122, %28 : vector<8x128xf32>
    %162 = arith.addf %160, %161 : vector<8x128xf32>
    %163 = arith.mulf %124, %25 : vector<8x128xf32>
    %164 = arith.addf %162, %163 : vector<8x128xf32>
    %165 = arith.mulf %120, %4 : vector<8x128xf32>
    %166 = arith.mulf %122, %7 : vector<8x128xf32>
    %167 = arith.addf %165, %166 : vector<8x128xf32>
    %168 = arith.mulf %124, %19 : vector<8x128xf32>
    %169 = arith.addf %167, %168 : vector<8x128xf32>
    %170 = arith.addf %98, %129 : vector<8x128xf32>
    %171 = arith.addf %99, %134 : vector<8x128xf32>
    %172 = arith.addf %100, %139 : vector<8x128xf32>
    %173 = arith.addf %101, %144 : vector<8x128xf32>
    %174 = arith.addf %102, %149 : vector<8x128xf32>
    %175 = arith.addf %103, %154 : vector<8x128xf32>
    %176 = arith.addf %104, %159 : vector<8x128xf32>
    %177 = arith.addf %105, %164 : vector<8x128xf32>
    %178 = arith.addf %106, %169 : vector<8x128xf32>
    %cst_29 = arith.constant 2.500000e-01 : f32
    %179 = vector.broadcast %cst_29 : f32 to vector<8x128xf32>
    %180 = arith.mulf %129, %179 : vector<8x128xf32>
    %cst_30 = arith.constant 2.500000e-01 : f32
    %181 = vector.broadcast %cst_30 : f32 to vector<8x128xf32>
    %182 = arith.mulf %134, %181 : vector<8x128xf32>
    %cst_31 = arith.constant 2.500000e-01 : f32
    %183 = vector.broadcast %cst_31 : f32 to vector<8x128xf32>
    %184 = arith.mulf %139, %183 : vector<8x128xf32>
    %cst_32 = arith.constant 2.500000e-01 : f32
    %185 = vector.broadcast %cst_32 : f32 to vector<8x128xf32>
    %186 = arith.mulf %144, %185 : vector<8x128xf32>
    %cst_33 = arith.constant 2.500000e-01 : f32
    %187 = vector.broadcast %cst_33 : f32 to vector<8x128xf32>
    %188 = arith.mulf %149, %187 : vector<8x128xf32>
    %cst_34 = arith.constant 2.500000e-01 : f32
    %189 = vector.broadcast %cst_34 : f32 to vector<8x128xf32>
    %190 = arith.mulf %154, %189 : vector<8x128xf32>
    %cst_35 = arith.constant 2.500000e-01 : f32
    %191 = vector.broadcast %cst_35 : f32 to vector<8x128xf32>
    %192 = arith.mulf %159, %191 : vector<8x128xf32>
    %cst_36 = arith.constant 2.500000e-01 : f32
    %193 = vector.broadcast %cst_36 : f32 to vector<8x128xf32>
    %194 = arith.mulf %164, %193 : vector<8x128xf32>
    %cst_37 = arith.constant 2.500000e-01 : f32
    %195 = vector.broadcast %cst_37 : f32 to vector<8x128xf32>
    %196 = arith.mulf %169, %195 : vector<8x128xf32>
    %197 = arith.mulf %180, %16 : vector<8x128xf32>
    %198 = arith.mulf %182, %13 : vector<8x128xf32>
    %199 = arith.addf %197, %198 : vector<8x128xf32>
    %200 = arith.mulf %184, %22 : vector<8x128xf32>
    %201 = arith.addf %199, %200 : vector<8x128xf32>
    %202 = arith.mulf %180, %10 : vector<8x128xf32>
    %203 = arith.mulf %182, %28 : vector<8x128xf32>
    %204 = arith.addf %202, %203 : vector<8x128xf32>
    %205 = arith.mulf %184, %25 : vector<8x128xf32>
    %206 = arith.addf %204, %205 : vector<8x128xf32>
    %207 = arith.mulf %180, %4 : vector<8x128xf32>
    %208 = arith.mulf %182, %7 : vector<8x128xf32>
    %209 = arith.addf %207, %208 : vector<8x128xf32>
    %210 = arith.mulf %184, %19 : vector<8x128xf32>
    %211 = arith.addf %209, %210 : vector<8x128xf32>
    %212 = arith.mulf %186, %16 : vector<8x128xf32>
    %213 = arith.mulf %188, %13 : vector<8x128xf32>
    %214 = arith.addf %212, %213 : vector<8x128xf32>
    %215 = arith.mulf %190, %22 : vector<8x128xf32>
    %216 = arith.addf %214, %215 : vector<8x128xf32>
    %217 = arith.mulf %186, %10 : vector<8x128xf32>
    %218 = arith.mulf %188, %28 : vector<8x128xf32>
    %219 = arith.addf %217, %218 : vector<8x128xf32>
    %220 = arith.mulf %190, %25 : vector<8x128xf32>
    %221 = arith.addf %219, %220 : vector<8x128xf32>
    %222 = arith.mulf %186, %4 : vector<8x128xf32>
    %223 = arith.mulf %188, %7 : vector<8x128xf32>
    %224 = arith.addf %222, %223 : vector<8x128xf32>
    %225 = arith.mulf %190, %19 : vector<8x128xf32>
    %226 = arith.addf %224, %225 : vector<8x128xf32>
    %227 = arith.mulf %192, %16 : vector<8x128xf32>
    %228 = arith.mulf %194, %13 : vector<8x128xf32>
    %229 = arith.addf %227, %228 : vector<8x128xf32>
    %230 = arith.mulf %196, %22 : vector<8x128xf32>
    %231 = arith.addf %229, %230 : vector<8x128xf32>
    %232 = arith.mulf %192, %10 : vector<8x128xf32>
    %233 = arith.mulf %194, %28 : vector<8x128xf32>
    %234 = arith.addf %232, %233 : vector<8x128xf32>
    %235 = arith.mulf %196, %25 : vector<8x128xf32>
    %236 = arith.addf %234, %235 : vector<8x128xf32>
    %237 = arith.mulf %192, %4 : vector<8x128xf32>
    %238 = arith.mulf %194, %7 : vector<8x128xf32>
    %239 = arith.addf %237, %238 : vector<8x128xf32>
    %240 = arith.mulf %196, %19 : vector<8x128xf32>
    %241 = arith.addf %239, %240 : vector<8x128xf32>
    %242 = arith.addf %170, %201 : vector<8x128xf32>
    %243 = arith.addf %171, %206 : vector<8x128xf32>
    %244 = arith.addf %172, %211 : vector<8x128xf32>
    %245 = arith.addf %173, %216 : vector<8x128xf32>
    %246 = arith.addf %174, %221 : vector<8x128xf32>
    %247 = arith.addf %175, %226 : vector<8x128xf32>
    %248 = arith.addf %176, %231 : vector<8x128xf32>
    %249 = arith.addf %177, %236 : vector<8x128xf32>
    %250 = arith.addf %178, %241 : vector<8x128xf32>
    %cst_38 = arith.constant 2.000000e-01 : f32
    %251 = vector.broadcast %cst_38 : f32 to vector<8x128xf32>
    %252 = arith.mulf %201, %251 : vector<8x128xf32>
    %cst_39 = arith.constant 2.000000e-01 : f32
    %253 = vector.broadcast %cst_39 : f32 to vector<8x128xf32>
    %254 = arith.mulf %206, %253 : vector<8x128xf32>
    %cst_40 = arith.constant 2.000000e-01 : f32
    %255 = vector.broadcast %cst_40 : f32 to vector<8x128xf32>
    %256 = arith.mulf %211, %255 : vector<8x128xf32>
    %cst_41 = arith.constant 2.000000e-01 : f32
    %257 = vector.broadcast %cst_41 : f32 to vector<8x128xf32>
    %258 = arith.mulf %216, %257 : vector<8x128xf32>
    %cst_42 = arith.constant 2.000000e-01 : f32
    %259 = vector.broadcast %cst_42 : f32 to vector<8x128xf32>
    %260 = arith.mulf %221, %259 : vector<8x128xf32>
    %cst_43 = arith.constant 2.000000e-01 : f32
    %261 = vector.broadcast %cst_43 : f32 to vector<8x128xf32>
    %262 = arith.mulf %226, %261 : vector<8x128xf32>
    %cst_44 = arith.constant 2.000000e-01 : f32
    %263 = vector.broadcast %cst_44 : f32 to vector<8x128xf32>
    %264 = arith.mulf %231, %263 : vector<8x128xf32>
    %cst_45 = arith.constant 2.000000e-01 : f32
    %265 = vector.broadcast %cst_45 : f32 to vector<8x128xf32>
    %266 = arith.mulf %236, %265 : vector<8x128xf32>
    %cst_46 = arith.constant 2.000000e-01 : f32
    %267 = vector.broadcast %cst_46 : f32 to vector<8x128xf32>
    %268 = arith.mulf %241, %267 : vector<8x128xf32>
    %269 = arith.mulf %252, %16 : vector<8x128xf32>
    %270 = arith.mulf %254, %13 : vector<8x128xf32>
    %271 = arith.addf %269, %270 : vector<8x128xf32>
    %272 = arith.mulf %256, %22 : vector<8x128xf32>
    %273 = arith.addf %271, %272 : vector<8x128xf32>
    %274 = arith.mulf %252, %10 : vector<8x128xf32>
    %275 = arith.mulf %254, %28 : vector<8x128xf32>
    %276 = arith.addf %274, %275 : vector<8x128xf32>
    %277 = arith.mulf %256, %25 : vector<8x128xf32>
    %278 = arith.addf %276, %277 : vector<8x128xf32>
    %279 = arith.mulf %252, %4 : vector<8x128xf32>
    %280 = arith.mulf %254, %7 : vector<8x128xf32>
    %281 = arith.addf %279, %280 : vector<8x128xf32>
    %282 = arith.mulf %256, %19 : vector<8x128xf32>
    %283 = arith.addf %281, %282 : vector<8x128xf32>
    %284 = arith.mulf %258, %16 : vector<8x128xf32>
    %285 = arith.mulf %260, %13 : vector<8x128xf32>
    %286 = arith.addf %284, %285 : vector<8x128xf32>
    %287 = arith.mulf %262, %22 : vector<8x128xf32>
    %288 = arith.addf %286, %287 : vector<8x128xf32>
    %289 = arith.mulf %258, %10 : vector<8x128xf32>
    %290 = arith.mulf %260, %28 : vector<8x128xf32>
    %291 = arith.addf %289, %290 : vector<8x128xf32>
    %292 = arith.mulf %262, %25 : vector<8x128xf32>
    %293 = arith.addf %291, %292 : vector<8x128xf32>
    %294 = arith.mulf %258, %4 : vector<8x128xf32>
    %295 = arith.mulf %260, %7 : vector<8x128xf32>
    %296 = arith.addf %294, %295 : vector<8x128xf32>
    %297 = arith.mulf %262, %19 : vector<8x128xf32>
    %298 = arith.addf %296, %297 : vector<8x128xf32>
    %299 = arith.mulf %264, %16 : vector<8x128xf32>
    %300 = arith.mulf %266, %13 : vector<8x128xf32>
    %301 = arith.addf %299, %300 : vector<8x128xf32>
    %302 = arith.mulf %268, %22 : vector<8x128xf32>
    %303 = arith.addf %301, %302 : vector<8x128xf32>
    %304 = arith.mulf %264, %10 : vector<8x128xf32>
    %305 = arith.mulf %266, %28 : vector<8x128xf32>
    %306 = arith.addf %304, %305 : vector<8x128xf32>
    %307 = arith.mulf %268, %25 : vector<8x128xf32>
    %308 = arith.addf %306, %307 : vector<8x128xf32>
    %309 = arith.mulf %264, %4 : vector<8x128xf32>
    %310 = arith.mulf %266, %7 : vector<8x128xf32>
    %311 = arith.addf %309, %310 : vector<8x128xf32>
    %312 = arith.mulf %268, %19 : vector<8x128xf32>
    %313 = arith.addf %311, %312 : vector<8x128xf32>
    %314 = arith.addf %242, %273 : vector<8x128xf32>
    %315 = arith.addf %243, %278 : vector<8x128xf32>
    %316 = arith.addf %244, %283 : vector<8x128xf32>
    %317 = arith.addf %245, %288 : vector<8x128xf32>
    %318 = arith.addf %246, %293 : vector<8x128xf32>
    %319 = arith.addf %247, %298 : vector<8x128xf32>
    %320 = arith.addf %248, %303 : vector<8x128xf32>
    %321 = arith.addf %249, %308 : vector<8x128xf32>
    %322 = arith.addf %250, %313 : vector<8x128xf32>
    %cst_47 = arith.constant 0.166666672 : f32
    %323 = vector.broadcast %cst_47 : f32 to vector<8x128xf32>
    %324 = arith.mulf %273, %323 : vector<8x128xf32>
    %cst_48 = arith.constant 0.166666672 : f32
    %325 = vector.broadcast %cst_48 : f32 to vector<8x128xf32>
    %326 = arith.mulf %278, %325 : vector<8x128xf32>
    %cst_49 = arith.constant 0.166666672 : f32
    %327 = vector.broadcast %cst_49 : f32 to vector<8x128xf32>
    %328 = arith.mulf %283, %327 : vector<8x128xf32>
    %cst_50 = arith.constant 0.166666672 : f32
    %329 = vector.broadcast %cst_50 : f32 to vector<8x128xf32>
    %330 = arith.mulf %288, %329 : vector<8x128xf32>
    %cst_51 = arith.constant 0.166666672 : f32
    %331 = vector.broadcast %cst_51 : f32 to vector<8x128xf32>
    %332 = arith.mulf %293, %331 : vector<8x128xf32>
    %cst_52 = arith.constant 0.166666672 : f32
    %333 = vector.broadcast %cst_52 : f32 to vector<8x128xf32>
    %334 = arith.mulf %298, %333 : vector<8x128xf32>
    %cst_53 = arith.constant 0.166666672 : f32
    %335 = vector.broadcast %cst_53 : f32 to vector<8x128xf32>
    %336 = arith.mulf %303, %335 : vector<8x128xf32>
    %cst_54 = arith.constant 0.166666672 : f32
    %337 = vector.broadcast %cst_54 : f32 to vector<8x128xf32>
    %338 = arith.mulf %308, %337 : vector<8x128xf32>
    %cst_55 = arith.constant 0.166666672 : f32
    %339 = vector.broadcast %cst_55 : f32 to vector<8x128xf32>
    %340 = arith.mulf %313, %339 : vector<8x128xf32>
    %341 = arith.mulf %324, %16 : vector<8x128xf32>
    %342 = arith.mulf %326, %13 : vector<8x128xf32>
    %343 = arith.addf %341, %342 : vector<8x128xf32>
    %344 = arith.mulf %328, %22 : vector<8x128xf32>
    %345 = arith.addf %343, %344 : vector<8x128xf32>
    %346 = arith.mulf %324, %10 : vector<8x128xf32>
    %347 = arith.mulf %326, %28 : vector<8x128xf32>
    %348 = arith.addf %346, %347 : vector<8x128xf32>
    %349 = arith.mulf %328, %25 : vector<8x128xf32>
    %350 = arith.addf %348, %349 : vector<8x128xf32>
    %351 = arith.mulf %324, %4 : vector<8x128xf32>
    %352 = arith.mulf %326, %7 : vector<8x128xf32>
    %353 = arith.addf %351, %352 : vector<8x128xf32>
    %354 = arith.mulf %328, %19 : vector<8x128xf32>
    %355 = arith.addf %353, %354 : vector<8x128xf32>
    %356 = arith.mulf %330, %16 : vector<8x128xf32>
    %357 = arith.mulf %332, %13 : vector<8x128xf32>
    %358 = arith.addf %356, %357 : vector<8x128xf32>
    %359 = arith.mulf %334, %22 : vector<8x128xf32>
    %360 = arith.addf %358, %359 : vector<8x128xf32>
    %361 = arith.mulf %330, %10 : vector<8x128xf32>
    %362 = arith.mulf %332, %28 : vector<8x128xf32>
    %363 = arith.addf %361, %362 : vector<8x128xf32>
    %364 = arith.mulf %334, %25 : vector<8x128xf32>
    %365 = arith.addf %363, %364 : vector<8x128xf32>
    %366 = arith.mulf %330, %4 : vector<8x128xf32>
    %367 = arith.mulf %332, %7 : vector<8x128xf32>
    %368 = arith.addf %366, %367 : vector<8x128xf32>
    %369 = arith.mulf %334, %19 : vector<8x128xf32>
    %370 = arith.addf %368, %369 : vector<8x128xf32>
    %371 = arith.mulf %336, %16 : vector<8x128xf32>
    %372 = arith.mulf %338, %13 : vector<8x128xf32>
    %373 = arith.addf %371, %372 : vector<8x128xf32>
    %374 = arith.mulf %340, %22 : vector<8x128xf32>
    %375 = arith.addf %373, %374 : vector<8x128xf32>
    %376 = arith.mulf %336, %10 : vector<8x128xf32>
    %377 = arith.mulf %338, %28 : vector<8x128xf32>
    %378 = arith.addf %376, %377 : vector<8x128xf32>
    %379 = arith.mulf %340, %25 : vector<8x128xf32>
    %380 = arith.addf %378, %379 : vector<8x128xf32>
    %381 = arith.mulf %336, %4 : vector<8x128xf32>
    %382 = arith.mulf %338, %7 : vector<8x128xf32>
    %383 = arith.addf %381, %382 : vector<8x128xf32>
    %384 = arith.mulf %340, %19 : vector<8x128xf32>
    %385 = arith.addf %383, %384 : vector<8x128xf32>
    %386 = arith.addf %314, %345 : vector<8x128xf32>
    %387 = arith.addf %315, %350 : vector<8x128xf32>
    %388 = arith.addf %316, %355 : vector<8x128xf32>
    %389 = arith.addf %317, %360 : vector<8x128xf32>
    %390 = arith.addf %318, %365 : vector<8x128xf32>
    %391 = arith.addf %319, %370 : vector<8x128xf32>
    %392 = arith.addf %320, %375 : vector<8x128xf32>
    %393 = arith.addf %321, %380 : vector<8x128xf32>
    %394 = arith.addf %322, %385 : vector<8x128xf32>
    %cst_56 = arith.constant 0.142857149 : f32
    %395 = vector.broadcast %cst_56 : f32 to vector<8x128xf32>
    %396 = arith.mulf %345, %395 : vector<8x128xf32>
    %cst_57 = arith.constant 0.142857149 : f32
    %397 = vector.broadcast %cst_57 : f32 to vector<8x128xf32>
    %398 = arith.mulf %350, %397 : vector<8x128xf32>
    %cst_58 = arith.constant 0.142857149 : f32
    %399 = vector.broadcast %cst_58 : f32 to vector<8x128xf32>
    %400 = arith.mulf %355, %399 : vector<8x128xf32>
    %cst_59 = arith.constant 0.142857149 : f32
    %401 = vector.broadcast %cst_59 : f32 to vector<8x128xf32>
    %402 = arith.mulf %360, %401 : vector<8x128xf32>
    %cst_60 = arith.constant 0.142857149 : f32
    %403 = vector.broadcast %cst_60 : f32 to vector<8x128xf32>
    %404 = arith.mulf %365, %403 : vector<8x128xf32>
    %cst_61 = arith.constant 0.142857149 : f32
    %405 = vector.broadcast %cst_61 : f32 to vector<8x128xf32>
    %406 = arith.mulf %370, %405 : vector<8x128xf32>
    %cst_62 = arith.constant 0.142857149 : f32
    %407 = vector.broadcast %cst_62 : f32 to vector<8x128xf32>
    %408 = arith.mulf %375, %407 : vector<8x128xf32>
    %cst_63 = arith.constant 0.142857149 : f32
    %409 = vector.broadcast %cst_63 : f32 to vector<8x128xf32>
    %410 = arith.mulf %380, %409 : vector<8x128xf32>
    %cst_64 = arith.constant 0.142857149 : f32
    %411 = vector.broadcast %cst_64 : f32 to vector<8x128xf32>
    %412 = arith.mulf %385, %411 : vector<8x128xf32>
    %413 = arith.mulf %396, %16 : vector<8x128xf32>
    %414 = arith.mulf %398, %13 : vector<8x128xf32>
    %415 = arith.addf %413, %414 : vector<8x128xf32>
    %416 = arith.mulf %400, %22 : vector<8x128xf32>
    %417 = arith.addf %415, %416 : vector<8x128xf32>
    %418 = arith.mulf %396, %10 : vector<8x128xf32>
    %419 = arith.mulf %398, %28 : vector<8x128xf32>
    %420 = arith.addf %418, %419 : vector<8x128xf32>
    %421 = arith.mulf %400, %25 : vector<8x128xf32>
    %422 = arith.addf %420, %421 : vector<8x128xf32>
    %423 = arith.mulf %396, %4 : vector<8x128xf32>
    %424 = arith.mulf %398, %7 : vector<8x128xf32>
    %425 = arith.addf %423, %424 : vector<8x128xf32>
    %426 = arith.mulf %400, %19 : vector<8x128xf32>
    %427 = arith.addf %425, %426 : vector<8x128xf32>
    %428 = arith.mulf %402, %16 : vector<8x128xf32>
    %429 = arith.mulf %404, %13 : vector<8x128xf32>
    %430 = arith.addf %428, %429 : vector<8x128xf32>
    %431 = arith.mulf %406, %22 : vector<8x128xf32>
    %432 = arith.addf %430, %431 : vector<8x128xf32>
    %433 = arith.mulf %402, %10 : vector<8x128xf32>
    %434 = arith.mulf %404, %28 : vector<8x128xf32>
    %435 = arith.addf %433, %434 : vector<8x128xf32>
    %436 = arith.mulf %406, %25 : vector<8x128xf32>
    %437 = arith.addf %435, %436 : vector<8x128xf32>
    %438 = arith.mulf %402, %4 : vector<8x128xf32>
    %439 = arith.mulf %404, %7 : vector<8x128xf32>
    %440 = arith.addf %438, %439 : vector<8x128xf32>
    %441 = arith.mulf %406, %19 : vector<8x128xf32>
    %442 = arith.addf %440, %441 : vector<8x128xf32>
    %443 = arith.mulf %408, %16 : vector<8x128xf32>
    %444 = arith.mulf %410, %13 : vector<8x128xf32>
    %445 = arith.addf %443, %444 : vector<8x128xf32>
    %446 = arith.mulf %412, %22 : vector<8x128xf32>
    %447 = arith.addf %445, %446 : vector<8x128xf32>
    %448 = arith.mulf %408, %10 : vector<8x128xf32>
    %449 = arith.mulf %410, %28 : vector<8x128xf32>
    %450 = arith.addf %448, %449 : vector<8x128xf32>
    %451 = arith.mulf %412, %25 : vector<8x128xf32>
    %452 = arith.addf %450, %451 : vector<8x128xf32>
    %453 = arith.mulf %408, %4 : vector<8x128xf32>
    %454 = arith.mulf %410, %7 : vector<8x128xf32>
    %455 = arith.addf %453, %454 : vector<8x128xf32>
    %456 = arith.mulf %412, %19 : vector<8x128xf32>
    %457 = arith.addf %455, %456 : vector<8x128xf32>
    %458 = arith.addf %386, %417 : vector<8x128xf32>
    %459 = arith.addf %387, %422 : vector<8x128xf32>
    %460 = arith.addf %388, %427 : vector<8x128xf32>
    %461 = arith.addf %389, %432 : vector<8x128xf32>
    %462 = arith.addf %390, %437 : vector<8x128xf32>
    %463 = arith.addf %391, %442 : vector<8x128xf32>
    %464 = arith.addf %392, %447 : vector<8x128xf32>
    %465 = arith.addf %393, %452 : vector<8x128xf32>
    %466 = arith.addf %394, %457 : vector<8x128xf32>
    %cst_65 = arith.constant 1.250000e-01 : f32
    %467 = vector.broadcast %cst_65 : f32 to vector<8x128xf32>
    %468 = arith.mulf %417, %467 : vector<8x128xf32>
    %cst_66 = arith.constant 1.250000e-01 : f32
    %469 = vector.broadcast %cst_66 : f32 to vector<8x128xf32>
    %470 = arith.mulf %422, %469 : vector<8x128xf32>
    %cst_67 = arith.constant 1.250000e-01 : f32
    %471 = vector.broadcast %cst_67 : f32 to vector<8x128xf32>
    %472 = arith.mulf %427, %471 : vector<8x128xf32>
    %cst_68 = arith.constant 1.250000e-01 : f32
    %473 = vector.broadcast %cst_68 : f32 to vector<8x128xf32>
    %474 = arith.mulf %432, %473 : vector<8x128xf32>
    %cst_69 = arith.constant 1.250000e-01 : f32
    %475 = vector.broadcast %cst_69 : f32 to vector<8x128xf32>
    %476 = arith.mulf %437, %475 : vector<8x128xf32>
    %cst_70 = arith.constant 1.250000e-01 : f32
    %477 = vector.broadcast %cst_70 : f32 to vector<8x128xf32>
    %478 = arith.mulf %442, %477 : vector<8x128xf32>
    %cst_71 = arith.constant 1.250000e-01 : f32
    %479 = vector.broadcast %cst_71 : f32 to vector<8x128xf32>
    %480 = arith.mulf %447, %479 : vector<8x128xf32>
    %cst_72 = arith.constant 1.250000e-01 : f32
    %481 = vector.broadcast %cst_72 : f32 to vector<8x128xf32>
    %482 = arith.mulf %452, %481 : vector<8x128xf32>
    %cst_73 = arith.constant 1.250000e-01 : f32
    %483 = vector.broadcast %cst_73 : f32 to vector<8x128xf32>
    %484 = arith.mulf %457, %483 : vector<8x128xf32>
    %485 = arith.mulf %468, %16 : vector<8x128xf32>
    %486 = arith.mulf %470, %13 : vector<8x128xf32>
    %487 = arith.addf %485, %486 : vector<8x128xf32>
    %488 = arith.mulf %472, %22 : vector<8x128xf32>
    %489 = arith.addf %487, %488 : vector<8x128xf32>
    %490 = arith.mulf %468, %10 : vector<8x128xf32>
    %491 = arith.mulf %470, %28 : vector<8x128xf32>
    %492 = arith.addf %490, %491 : vector<8x128xf32>
    %493 = arith.mulf %472, %25 : vector<8x128xf32>
    %494 = arith.addf %492, %493 : vector<8x128xf32>
    %495 = arith.mulf %468, %4 : vector<8x128xf32>
    %496 = arith.mulf %470, %7 : vector<8x128xf32>
    %497 = arith.addf %495, %496 : vector<8x128xf32>
    %498 = arith.mulf %472, %19 : vector<8x128xf32>
    %499 = arith.addf %497, %498 : vector<8x128xf32>
    %500 = arith.mulf %474, %16 : vector<8x128xf32>
    %501 = arith.mulf %476, %13 : vector<8x128xf32>
    %502 = arith.addf %500, %501 : vector<8x128xf32>
    %503 = arith.mulf %478, %22 : vector<8x128xf32>
    %504 = arith.addf %502, %503 : vector<8x128xf32>
    %505 = arith.mulf %474, %10 : vector<8x128xf32>
    %506 = arith.mulf %476, %28 : vector<8x128xf32>
    %507 = arith.addf %505, %506 : vector<8x128xf32>
    %508 = arith.mulf %478, %25 : vector<8x128xf32>
    %509 = arith.addf %507, %508 : vector<8x128xf32>
    %510 = arith.mulf %474, %4 : vector<8x128xf32>
    %511 = arith.mulf %476, %7 : vector<8x128xf32>
    %512 = arith.addf %510, %511 : vector<8x128xf32>
    %513 = arith.mulf %478, %19 : vector<8x128xf32>
    %514 = arith.addf %512, %513 : vector<8x128xf32>
    %515 = arith.mulf %480, %16 : vector<8x128xf32>
    %516 = arith.mulf %482, %13 : vector<8x128xf32>
    %517 = arith.addf %515, %516 : vector<8x128xf32>
    %518 = arith.mulf %484, %22 : vector<8x128xf32>
    %519 = arith.addf %517, %518 : vector<8x128xf32>
    %520 = arith.mulf %480, %10 : vector<8x128xf32>
    %521 = arith.mulf %482, %28 : vector<8x128xf32>
    %522 = arith.addf %520, %521 : vector<8x128xf32>
    %523 = arith.mulf %484, %25 : vector<8x128xf32>
    %524 = arith.addf %522, %523 : vector<8x128xf32>
    %525 = arith.mulf %480, %4 : vector<8x128xf32>
    %526 = arith.mulf %482, %7 : vector<8x128xf32>
    %527 = arith.addf %525, %526 : vector<8x128xf32>
    %528 = arith.mulf %484, %19 : vector<8x128xf32>
    %529 = arith.addf %527, %528 : vector<8x128xf32>
    %530 = arith.addf %458, %489 : vector<8x128xf32>
    %531 = arith.addf %459, %494 : vector<8x128xf32>
    %532 = arith.addf %460, %499 : vector<8x128xf32>
    %533 = arith.addf %461, %504 : vector<8x128xf32>
    %534 = arith.addf %462, %509 : vector<8x128xf32>
    %535 = arith.addf %463, %514 : vector<8x128xf32>
    %536 = arith.addf %464, %519 : vector<8x128xf32>
    %537 = arith.addf %465, %524 : vector<8x128xf32>
    %538 = arith.addf %466, %529 : vector<8x128xf32>
    %cst_74 = arith.constant 0.111111112 : f32
    %539 = vector.broadcast %cst_74 : f32 to vector<8x128xf32>
    %540 = arith.mulf %489, %539 : vector<8x128xf32>
    %cst_75 = arith.constant 0.111111112 : f32
    %541 = vector.broadcast %cst_75 : f32 to vector<8x128xf32>
    %542 = arith.mulf %494, %541 : vector<8x128xf32>
    %cst_76 = arith.constant 0.111111112 : f32
    %543 = vector.broadcast %cst_76 : f32 to vector<8x128xf32>
    %544 = arith.mulf %499, %543 : vector<8x128xf32>
    %cst_77 = arith.constant 0.111111112 : f32
    %545 = vector.broadcast %cst_77 : f32 to vector<8x128xf32>
    %546 = arith.mulf %504, %545 : vector<8x128xf32>
    %cst_78 = arith.constant 0.111111112 : f32
    %547 = vector.broadcast %cst_78 : f32 to vector<8x128xf32>
    %548 = arith.mulf %509, %547 : vector<8x128xf32>
    %cst_79 = arith.constant 0.111111112 : f32
    %549 = vector.broadcast %cst_79 : f32 to vector<8x128xf32>
    %550 = arith.mulf %514, %549 : vector<8x128xf32>
    %cst_80 = arith.constant 0.111111112 : f32
    %551 = vector.broadcast %cst_80 : f32 to vector<8x128xf32>
    %552 = arith.mulf %519, %551 : vector<8x128xf32>
    %cst_81 = arith.constant 0.111111112 : f32
    %553 = vector.broadcast %cst_81 : f32 to vector<8x128xf32>
    %554 = arith.mulf %524, %553 : vector<8x128xf32>
    %cst_82 = arith.constant 0.111111112 : f32
    %555 = vector.broadcast %cst_82 : f32 to vector<8x128xf32>
    %556 = arith.mulf %529, %555 : vector<8x128xf32>
    %557 = arith.mulf %540, %16 : vector<8x128xf32>
    %558 = arith.mulf %542, %13 : vector<8x128xf32>
    %559 = arith.addf %557, %558 : vector<8x128xf32>
    %560 = arith.mulf %544, %22 : vector<8x128xf32>
    %561 = arith.addf %559, %560 : vector<8x128xf32>
    %562 = arith.mulf %540, %10 : vector<8x128xf32>
    %563 = arith.mulf %542, %28 : vector<8x128xf32>
    %564 = arith.addf %562, %563 : vector<8x128xf32>
    %565 = arith.mulf %544, %25 : vector<8x128xf32>
    %566 = arith.addf %564, %565 : vector<8x128xf32>
    %567 = arith.mulf %540, %4 : vector<8x128xf32>
    %568 = arith.mulf %542, %7 : vector<8x128xf32>
    %569 = arith.addf %567, %568 : vector<8x128xf32>
    %570 = arith.mulf %544, %19 : vector<8x128xf32>
    %571 = arith.addf %569, %570 : vector<8x128xf32>
    %572 = arith.mulf %546, %16 : vector<8x128xf32>
    %573 = arith.mulf %548, %13 : vector<8x128xf32>
    %574 = arith.addf %572, %573 : vector<8x128xf32>
    %575 = arith.mulf %550, %22 : vector<8x128xf32>
    %576 = arith.addf %574, %575 : vector<8x128xf32>
    %577 = arith.mulf %546, %10 : vector<8x128xf32>
    %578 = arith.mulf %548, %28 : vector<8x128xf32>
    %579 = arith.addf %577, %578 : vector<8x128xf32>
    %580 = arith.mulf %550, %25 : vector<8x128xf32>
    %581 = arith.addf %579, %580 : vector<8x128xf32>
    %582 = arith.mulf %546, %4 : vector<8x128xf32>
    %583 = arith.mulf %548, %7 : vector<8x128xf32>
    %584 = arith.addf %582, %583 : vector<8x128xf32>
    %585 = arith.mulf %550, %19 : vector<8x128xf32>
    %586 = arith.addf %584, %585 : vector<8x128xf32>
    %587 = arith.mulf %552, %16 : vector<8x128xf32>
    %588 = arith.mulf %554, %13 : vector<8x128xf32>
    %589 = arith.addf %587, %588 : vector<8x128xf32>
    %590 = arith.mulf %556, %22 : vector<8x128xf32>
    %591 = arith.addf %589, %590 : vector<8x128xf32>
    %592 = arith.mulf %552, %10 : vector<8x128xf32>
    %593 = arith.mulf %554, %28 : vector<8x128xf32>
    %594 = arith.addf %592, %593 : vector<8x128xf32>
    %595 = arith.mulf %556, %25 : vector<8x128xf32>
    %596 = arith.addf %594, %595 : vector<8x128xf32>
    %597 = arith.mulf %552, %4 : vector<8x128xf32>
    %598 = arith.mulf %554, %7 : vector<8x128xf32>
    %599 = arith.addf %597, %598 : vector<8x128xf32>
    %600 = arith.mulf %556, %19 : vector<8x128xf32>
    %601 = arith.addf %599, %600 : vector<8x128xf32>
    %602 = arith.addf %530, %561 : vector<8x128xf32>
    %603 = arith.addf %531, %566 : vector<8x128xf32>
    %604 = arith.addf %532, %571 : vector<8x128xf32>
    %605 = arith.addf %533, %576 : vector<8x128xf32>
    %606 = arith.addf %534, %581 : vector<8x128xf32>
    %607 = arith.addf %535, %586 : vector<8x128xf32>
    %608 = arith.addf %536, %591 : vector<8x128xf32>
    %609 = arith.addf %537, %596 : vector<8x128xf32>
    %610 = arith.addf %538, %601 : vector<8x128xf32>
    %c0_83 = arith.constant 0 : index
    %611 = arith.index_cast %1 : i32 to index
    %c0_84 = arith.constant 0 : index
    %612 = vector.load %arg2[%c0_83, %611, %c0_84] : memref<9x8x128xf32, #tpu.memory_space<vmem>>, vector<1x8x128xf32>
    %613 = vector.shape_cast %612 : vector<1x8x128xf32> to vector<8x128xf32>
    %614 = vector.shape_cast %602 : vector<8x128xf32> to vector<1x8x128xf32>
    tpu.vector_store %arg2[%c0_83, %611, %c0_84], %614 {strides = array<i32>} : memref<9x8x128xf32, #tpu.memory_space<vmem>>, vector<1x8x128xf32>,
    %c1_85 = arith.constant 1 : index
    %615 = arith.index_cast %1 : i32 to index
    %c0_86 = arith.constant 0 : index
    %616 = vector.load %arg2[%c1_85, %615, %c0_86] : memref<9x8x128xf32, #tpu.memory_space<vmem>>, vector<1x8x128xf32>
    %617 = vector.shape_cast %616 : vector<1x8x128xf32> to vector<8x128xf32>
    %618 = vector.shape_cast %603 : vector<8x128xf32> to vector<1x8x128xf32>
    tpu.vector_store %arg2[%c1_85, %615, %c0_86], %618 {strides = array<i32>} : memref<9x8x128xf32, #tpu.memory_space<vmem>>, vector<1x8x128xf32>,
    %c2_87 = arith.constant 2 : index
    %619 = arith.index_cast %1 : i32 to index
    %c0_88 = arith.constant 0 : index
    %620 = vector.load %arg2[%c2_87, %619, %c0_88] : memref<9x8x128xf32, #tpu.memory_space<vmem>>, vector<1x8x128xf32>
    %621 = vector.shape_cast %620 : vector<1x8x128xf32> to vector<8x128xf32>
    %622 = vector.shape_cast %604 : vector<8x128xf32> to vector<1x8x128xf32>
    tpu.vector_store %arg2[%c2_87, %619, %c0_88], %622 {strides = array<i32>} : memref<9x8x128xf32, #tpu.memory_space<vmem>>, vector<1x8x128xf32>,
    %c3_89 = arith.constant 3 : index
    %623 = arith.index_cast %1 : i32 to index
    %c0_90 = arith.constant 0 : index
    %624 = vector.load %arg2[%c3_89, %623, %c0_90] : memref<9x8x128xf32, #tpu.memory_space<vmem>>, vector<1x8x128xf32>
    %625 = vector.shape_cast %624 : vector<1x8x128xf32> to vector<8x128xf32>
    %626 = vector.shape_cast %605 : vector<8x128xf32> to vector<1x8x128xf32>
    tpu.vector_store %arg2[%c3_89, %623, %c0_90], %626 {strides = array<i32>} : memref<9x8x128xf32, #tpu.memory_space<vmem>>, vector<1x8x128xf32>,
    %c4_91 = arith.constant 4 : index
    %627 = arith.index_cast %1 : i32 to index
    %c0_92 = arith.constant 0 : index
    %628 = vector.load %arg2[%c4_91, %627, %c0_92] : memref<9x8x128xf32, #tpu.memory_space<vmem>>, vector<1x8x128xf32>
    %629 = vector.shape_cast %628 : vector<1x8x128xf32> to vector<8x128xf32>
    %630 = vector.shape_cast %606 : vector<8x128xf32> to vector<1x8x128xf32>
    tpu.vector_store %arg2[%c4_91, %627, %c0_92], %630 {strides = array<i32>} : memref<9x8x128xf32, #tpu.memory_space<vmem>>, vector<1x8x128xf32>,
    %c5_93 = arith.constant 5 : index
    %631 = arith.index_cast %1 : i32 to index
    %c0_94 = arith.constant 0 : index
    %632 = vector.load %arg2[%c5_93, %631, %c0_94] : memref<9x8x128xf32, #tpu.memory_space<vmem>>, vector<1x8x128xf32>
    %633 = vector.shape_cast %632 : vector<1x8x128xf32> to vector<8x128xf32>
    %634 = vector.shape_cast %607 : vector<8x128xf32> to vector<1x8x128xf32>
    tpu.vector_store %arg2[%c5_93, %631, %c0_94], %634 {strides = array<i32>} : memref<9x8x128xf32, #tpu.memory_space<vmem>>, vector<1x8x128xf32>,
    %c6_95 = arith.constant 6 : index
    %635 = arith.index_cast %1 : i32 to index
    %c0_96 = arith.constant 0 : index
    %636 = vector.load %arg2[%c6_95, %635, %c0_96] : memref<9x8x128xf32, #tpu.memory_space<vmem>>, vector<1x8x128xf32>
    %637 = vector.shape_cast %636 : vector<1x8x128xf32> to vector<8x128xf32>
    %638 = vector.shape_cast %608 : vector<8x128xf32> to vector<1x8x128xf32>
    tpu.vector_store %arg2[%c6_95, %635, %c0_96], %638 {strides = array<i32>} : memref<9x8x128xf32, #tpu.memory_space<vmem>>, vector<1x8x128xf32>,
    %c7_97 = arith.constant 7 : index
    %639 = arith.index_cast %1 : i32 to index
    %c0_98 = arith.constant 0 : index
    %640 = vector.load %arg2[%c7_97, %639, %c0_98] : memref<9x8x128xf32, #tpu.memory_space<vmem>>, vector<1x8x128xf32>
    %641 = vector.shape_cast %640 : vector<1x8x128xf32> to vector<8x128xf32>
    %642 = vector.shape_cast %609 : vector<8x128xf32> to vector<1x8x128xf32>
    tpu.vector_store %arg2[%c7_97, %639, %c0_98], %642 {strides = array<i32>} : memref<9x8x128xf32, #tpu.memory_space<vmem>>, vector<1x8x128xf32>,
    %c8 = arith.constant 8 : index
    %643 = arith.index_cast %1 : i32 to index
    %c0_99 = arith.constant 0 : index
    %644 = vector.load %arg2[%c8, %643, %c0_99] : memref<9x8x128xf32, #tpu.memory_space<vmem>>, vector<1x8x128xf32>
    %645 = vector.shape_cast %644 : vector<1x8x128xf32> to vector<8x128xf32>
    %646 = vector.shape_cast %610 : vector<8x128xf32> to vector<1x8x128xf32>
    tpu.vector_store %arg2[%c8, %643, %c0_99], %646 {strides = array<i32>} : memref<9x8x128xf32, #tpu.memory_space<vmem>>, vector<1x8x128xf32>,
    %c1_i32 = arith.constant 1 : i32
    return
  }
  func.func @transform_0(%arg0: i32) -> (i32, i32, i32) {
    %c0_i32 = arith.constant 0 : i32
    %c0_i32_0 = arith.constant 0 : i32
    %c0_i32_1 = arith.constant 0 : i32
    return %c0_i32, %arg0, %c0_i32_0 : i32, i32, i32
  }
  func.func @transform_1(%arg0: i32) -> (i32, i32, i32) {
    %c0_i32 = arith.constant 0 : i32
    %c0_i32_0 = arith.constant 0 : i32
    %c0_i32_1 = arith.constant 0 : i32
    return %c0_i32, %arg0, %c0_i32_0 : i32, i32, i32
  }
}

</mosaic_0001>

<llo_original>
// kernel: tpu_custom_call.1
$region0: #{tpu_custom_call.1}
  #allocation0 [shape = 'u32[]', space=smem, size = 0x4, offset = 0x4, fixed_abs, tag = 'smem constant byte address 0x4 - core index']
  #allocation1 [shape = 'u32[144,128]{1,0:T(1,128)}', space=vmem, size = 0x12000, scoped, tag = 'internal scratch']
  %s0 = inlined_call_operand.hbm [shape: f32[8,8,128], index: 0, kind: input, shape index: {}]
  %s1 = inlined_call_operand.hbm [shape: f32[9,8,128], index: 1, kind: output, shape index: {}]
  %s2 = sld [smem:[#allocation0]]
  $region18: #{tpu_custom_call.1} parent=0
    _
  %s4 = ssub.s32 1, %s2
  %s5 = scalar_select 0, %s4, %s2
  $region1: #{tpu_custom_call.1} parent=0
    #allocation2 [shape = 'u8[32768]{0}', space=vmem, size = 0x8000, scoped, tag = 'input window, operand 0, single buffered']
    #allocation3 [shape = 's32[1]{0}', space=sflag, size = 0x4, scoped, tag = 'scoped memory for tpu_custom_call.1']
    #allocation4 [shape = 's32[1]{0}', space=sflag, size = 0x4, scoped, tag = 'scoped memory for tpu_custom_call.1']
    #allocation5 [shape = 'u8[36864]{0}', space=vmem, size = 0x9000, scoped, tag = 'output window, operand 0, single buffered']
    %6 = vsyncpa [#allocation3], 0
    %7 = vsyncpa [#allocation4], 0
    // Predicated region
    $region2: #{tpu_custom_call.1} parent=1 // pred_check
      _
    $region3: #{tpu_custom_call.1} parent=1 // pred_check_branch
      %9 = sbr.rel (0) target = $region5
    $region4: #{tpu_custom_call.1} parent=1 // pred_region
      %s11 = ssub.s32 1024, 1024
      %12 = vsyncadd [#allocation3], %s11
      %s13 = sshll.u32 [#allocation2], 4
      %s14 = int_to_ptr.vmem [resolvable:$true] %s13
      %19 = dma.hbm_to_vmem [thread:$0]  %s0, 1024, %s14, [#allocation3], 128, 128, 8
    $region5: #{tpu_custom_call.1} parent=1 // pred_fallthru
      _
    // Predicated region
    $region6: #{tpu_custom_call.1} parent=1 // pred_check
      _
    $region7: #{tpu_custom_call.1} parent=1 // pred_check_branch
      %21 = sbr.rel (0) target = $region9
    $region8: #{tpu_custom_call.1} parent=1 // pred_region
      %22 = dma.done [#allocation3], 1024
    $region9: #{tpu_custom_call.1} parent=1 // pred_fallthru
      _
    %v23 = vld [vmem:[#allocation2] sm:$0xff]
    %s24 = sadd.s32 0, 8
    %s25 = scalar_lea.vmem [#allocation2], %s24
    %v26 = vld [vmem:[%s25] sm:$0xff]
    %s27 = sadd.s32 0, 16
    %s28 = scalar_lea.vmem [#allocation2], %s27
    %v29 = vld [vmem:[%s28] sm:$0xff]
    %s30 = sadd.s32 0, 24
    %s31 = scalar_lea.vmem [#allocation2], %s30
    %v32 = vld [vmem:[%s31] sm:$0xff]
    %s33 = sadd.s32 0, 32
    %s34 = scalar_lea.vmem [#allocation2], %s33
    %v35 = vld [vmem:[%s34] sm:$0xff]
    %s36 = sadd.s32 0, 40
    %s37 = scalar_lea.vmem [#allocation2], %s36
    %v38 = vld [vmem:[%s37] sm:$0xff]
    %s39 = sadd.s32 0, 48
    %s40 = scalar_lea.vmem [#allocation2], %s39
    %v41 = vld [vmem:[%s40] sm:$0xff]
    %s42 = sadd.s32 0, 56
    %s43 = scalar_lea.vmem [#allocation2], %s42
    %v44 = vld [vmem:[%s43] sm:$0xff]
    %v45 = vsub.f32 0.0, %v35
    %v46 = vsub.f32 %v45, %v38
    %v47 = vadd.f32 %v35, 1.0
    %v48 = vadd.f32 %v46, 1.0
    %v49 = vadd.f32 %v38, 1.0
    %v50 = vmul.f32 %v35, 0.5
    %v51 = vmul.f32 %v29, 0.5
    %v52 = vmul.f32 %v23, 0.5
    %v53 = vmul.f32 %v32, 0.5
    %v54 = vmul.f32 %v46, 0.5
    %v55 = vmul.f32 %v26, 0.5
    %v56 = vmul.f32 %v41, 0.5
    %v57 = vmul.f32 %v44, 0.5
    %v58 = vmul.f32 %v38, 0.5
    %v59 = vmul.f32 %v50, %v35
    %v60 = vmul.f32 %v51, %v32
    %v61 = vadd.f32 %v59, %v60
    %v62 = vmul.f32 %v52, %v41
    %v63 = vadd.f32 %v61, %v62
    %v64 = vmul.f32 %v50, %v29
    %v65 = vmul.f32 %v51, %v46
    %v66 = vadd.f32 %v64, %v65
    %v67 = vmul.f32 %v52, %v44
    %v68 = vadd.f32 %v66, %v67
    %v69 = vmul.f32 %v50, %v23
    %v70 = vmul.f32 %v51, %v26
    %v71 = vadd.f32 %v69, %v70
    %v72 = vmul.f32 %v52, %v38
    %v73 = vadd.f32 %v71, %v72
    %v74 = vmul.f32 %v53, %v35
    %v75 = vmul.f32 %v54, %v32
    %v76 = vadd.f32 %v74, %v75
    %v77 = vmul.f32 %v55, %v41
    %v78 = vadd.f32 %v76, %v77
    %v79 = vmul.f32 %v53, %v29
    %v80 = vmul.f32 %v54, %v46
    %v81 = vadd.f32 %v79, %v80
    %v82 = vmul.f32 %v55, %v44
    %v83 = vadd.f32 %v81, %v82
    %v84 = vmul.f32 %v53, %v23
    %v85 = vmul.f32 %v54, %v26
    %v86 = vadd.f32 %v84, %v85
    %v87 = vmul.f32 %v55, %v38
    %v88 = vadd.f32 %v86, %v87
    %v89 = vmul.f32 %v56, %v35
    %v90 = vmul.f32 %v57, %v32
    %v91 = vadd.f32 %v89, %v90
    %v92 = vmul.f32 %v58, %v41
    %v93 = vadd.f32 %v91, %v92
    %v94 = vmul.f32 %v56, %v29
    %v95 = vmul.f32 %v57, %v46
    %v96 = vadd.f32 %v94, %v95
    %v97 = vmul.f32 %v58, %v44
    %v98 = vadd.f32 %v96, %v97
    %v99 = vmul.f32 %v56, %v23
    %v100 = vmul.f32 %v57, %v26
    %v101 = vadd.f32 %v99, %v100
    %v102 = vmul.f32 %v58, %v38
    %v103 = vadd.f32 %v101, %v102
    %v104 = vadd.f32 %v47, %v63
    %v105 = vadd.f32 %v29, %v68
    %v106 = vadd.f32 %v23, %v73
    %v107 = vadd.f32 %v32, %v78
    %v108 = vadd.f32 %v48, %v83
    %v109 = vadd.f32 %v26, %v88
    %v110 = vadd.f32 %v41, %v93
    %v111 = vadd.f32 %v44, %v98
    %v112 = vadd.f32 %v49, %v103
    %v113 = vmul.f32 %v63, 0.33333334
    %v114 = vmul.f32 %v68, 0.33333334
    %v115 = vmul.f32 %v73, 0.33333334
    %v116 = vmul.f32 %v78, 0.33333334
    %v117 = vmul.f32 %v83, 0.33333334
    %v118 = vmul.f32 %v88, 0.33333334
    %v119 = vmul.f32 %v93, 0.33333334
    %v120 = vmul.f32 %v98, 0.33333334
    %v121 = vmul.f32 %v103, 0.33333334
    %v122 = vmul.f32 %v113, %v35
    %v123 = vmul.f32 %v114, %v32
    %v124 = vadd.f32 %v122, %v123
    %v125 = vmul.f32 %v115, %v41
    %v126 = vadd.f32 %v124, %v125
    %v127 = vmul.f32 %v113, %v29
    %v128 = vmul.f32 %v114, %v46
    %v129 = vadd.f32 %v127, %v128
    %v130 = vmul.f32 %v115, %v44
    %v131 = vadd.f32 %v129, %v130
    %v132 = vmul.f32 %v113, %v23
    %v133 = vmul.f32 %v114, %v26
    %v134 = vadd.f32 %v132, %v133
    %v135 = vmul.f32 %v115, %v38
    %v136 = vadd.f32 %v134, %v135
    %v137 = vmul.f32 %v116, %v35
    %v138 = vmul.f32 %v117, %v32
    %v139 = vadd.f32 %v137, %v138
    %v140 = vmul.f32 %v118, %v41
    %v141 = vadd.f32 %v139, %v140
    %v142 = vmul.f32 %v116, %v29
    %v143 = vmul.f32 %v117, %v46
    %v144 = vadd.f32 %v142, %v143
    %v145 = vmul.f32 %v118, %v44
    %v146 = vadd.f32 %v144, %v145
    %v147 = vmul.f32 %v116, %v23
    %v148 = vmul.f32 %v117, %v26
    %v149 = vadd.f32 %v147, %v148
    %v150 = vmul.f32 %v118, %v38
    %v151 = vadd.f32 %v149, %v150
    %v152 = vmul.f32 %v119, %v35
    %v153 = vmul.f32 %v120, %v32
    %v154 = vadd.f32 %v152, %v153
    %v155 = vmul.f32 %v121, %v41
    %v156 = vadd.f32 %v154, %v155
    %v157 = vmul.f32 %v119, %v29
    %v158 = vmul.f32 %v120, %v46
    %v159 = vadd.f32 %v157, %v158
    %v160 = vmul.f32 %v121, %v44
    %v161 = vadd.f32 %v159, %v160
    %v162 = vmul.f32 %v119, %v23
    %v163 = vmul.f32 %v120, %v26
    %v164 = vadd.f32 %v162, %v163
    %v165 = vmul.f32 %v121, %v38
    %v166 = vadd.f32 %v164, %v165
    %v167 = vadd.f32 %v104, %v126
    %v168 = vadd.f32 %v105, %v131
    %v169 = vadd.f32 %v106, %v136
    %v170 = vadd.f32 %v107, %v141
    %v171 = vadd.f32 %v108, %v146
    %v172 = vadd.f32 %v109, %v151
    %v173 = vadd.f32 %v110, %v156
    %v174 = vadd.f32 %v111, %v161
    %v175 = vadd.f32 %v112, %v166
    %v176 = vmul.f32 %v126, 0.25
    %v177 = vmul.f32 %v131, 0.25
    %v178 = vmul.f32 %v136, 0.25
    %v179 = vmul.f32 %v141, 0.25
    %v180 = vmul.f32 %v146, 0.25
    %v181 = vmul.f32 %v151, 0.25
    %v182 = vmul.f32 %v156, 0.25
    %v183 = vmul.f32 %v161, 0.25
    %v184 = vmul.f32 %v166, 0.25
    %v185 = vmul.f32 %v176, %v35
    %v186 = vmul.f32 %v177, %v32
    %v187 = vadd.f32 %v185, %v186
    %v188 = vmul.f32 %v178, %v41
    %v189 = vadd.f32 %v187, %v188
    %v190 = vmul.f32 %v176, %v29
    %v191 = vmul.f32 %v177, %v46
    %v192 = vadd.f32 %v190, %v191
    %v193 = vmul.f32 %v178, %v44
    %v194 = vadd.f32 %v192, %v193
    %v195 = vmul.f32 %v176, %v23
    %v196 = vmul.f32 %v177, %v26
    %v197 = vadd.f32 %v195, %v196
    %v198 = vmul.f32 %v178, %v38
    %v199 = vadd.f32 %v197, %v198
    %v200 = vmul.f32 %v179, %v35
    %v201 = vmul.f32 %v180, %v32
    %v202 = vadd.f32 %v200, %v201
    %v203 = vmul.f32 %v181, %v41
    %v204 = vadd.f32 %v202, %v203
    %v205 = vmul.f32 %v179, %v29
    %v206 = vmul.f32 %v180, %v46
    %v207 = vadd.f32 %v205, %v206
    %v208 = vmul.f32 %v181, %v44
    %v209 = vadd.f32 %v207, %v208
    %v210 = vmul.f32 %v179, %v23
    %v211 = vmul.f32 %v180, %v26
    %v212 = vadd.f32 %v210, %v211
    %v213 = vmul.f32 %v181, %v38
    %v214 = vadd.f32 %v212, %v213
    %v215 = vmul.f32 %v182, %v35
    %v216 = vmul.f32 %v183, %v32
    %v217 = vadd.f32 %v215, %v216
    %v218 = vmul.f32 %v184, %v41
    %v219 = vadd.f32 %v217, %v218
    %v220 = vmul.f32 %v182, %v29
    %v221 = vmul.f32 %v183, %v46
    %v222 = vadd.f32 %v220, %v221
    %v223 = vmul.f32 %v184, %v44
    %v224 = vadd.f32 %v222, %v223
    %v225 = vmul.f32 %v182, %v23
    %v226 = vmul.f32 %v183, %v26
    %v227 = vadd.f32 %v225, %v226
    %v228 = vmul.f32 %v184, %v38
    %v229 = vadd.f32 %v227, %v228
    %v230 = vadd.f32 %v167, %v189
    %v231 = vadd.f32 %v168, %v194
    %v232 = vadd.f32 %v169, %v199
    %v233 = vadd.f32 %v170, %v204
    %v234 = vadd.f32 %v171, %v209
    %v235 = vadd.f32 %v172, %v214
    %v236 = vadd.f32 %v173, %v219
    %v237 = vadd.f32 %v174, %v224
    %v238 = vadd.f32 %v175, %v229
    %v239 = vmul.f32 %v189, 0.2
    %v240 = vmul.f32 %v194, 0.2
    %v241 = vmul.f32 %v199, 0.2
    %v242 = vmul.f32 %v204, 0.2
    %v243 = vmul.f32 %v209, 0.2
    %v244 = vmul.f32 %v214, 0.2
    %v245 = vmul.f32 %v219, 0.2
    %v246 = vmul.f32 %v224, 0.2
    %v247 = vmul.f32 %v229, 0.2
    %v248 = vmul.f32 %v239, %v35
    %v249 = vmul.f32 %v240, %v32
    %v250 = vadd.f32 %v248, %v249
    %v251 = vmul.f32 %v241, %v41
    %v252 = vadd.f32 %v250, %v251
    %v253 = vmul.f32 %v239, %v29
    %v254 = vmul.f32 %v240, %v46
    %v255 = vadd.f32 %v253, %v254
    %v256 = vmul.f32 %v241, %v44
    %v257 = vadd.f32 %v255, %v256
    %v258 = vmul.f32 %v239, %v23
    %v259 = vmul.f32 %v240, %v26
    %v260 = vadd.f32 %v258, %v259
    %v261 = vmul.f32 %v241, %v38
    %v262 = vadd.f32 %v260, %v261
    %v263 = vmul.f32 %v242, %v35
    %v264 = vmul.f32 %v243, %v32
    %v265 = vadd.f32 %v263, %v264
    %v266 = vmul.f32 %v244, %v41
    %v267 = vadd.f32 %v265, %v266
    %v268 = vmul.f32 %v242, %v29
    %v269 = vmul.f32 %v243, %v46
    %v270 = vadd.f32 %v268, %v269
    %v271 = vmul.f32 %v244, %v44
    %v272 = vadd.f32 %v270, %v271
    %v273 = vmul.f32 %v242, %v23
    %v274 = vmul.f32 %v243, %v26
    %v275 = vadd.f32 %v273, %v274
    %v276 = vmul.f32 %v244, %v38
    %v277 = vadd.f32 %v275, %v276
    %v278 = vmul.f32 %v245, %v35
    %v279 = vmul.f32 %v246, %v32
    %v280 = vadd.f32 %v278, %v279
    %v281 = vmul.f32 %v247, %v41
    %v282 = vadd.f32 %v280, %v281
    %v283 = vmul.f32 %v245, %v29
    %v284 = vmul.f32 %v246, %v46
    %v285 = vadd.f32 %v283, %v284
    %v286 = vmul.f32 %v247, %v44
    %v287 = vadd.f32 %v285, %v286
    %v288 = vmul.f32 %v245, %v23
    %v289 = vmul.f32 %v246, %v26
    %v290 = vadd.f32 %v288, %v289
    %v291 = vmul.f32 %v247, %v38
    %v292 = vadd.f32 %v290, %v291
    %v293 = vadd.f32 %v230, %v252
    %v294 = vadd.f32 %v231, %v257
    %v295 = vadd.f32 %v232, %v262
    %v296 = vadd.f32 %v233, %v267
    %v297 = vadd.f32 %v234, %v272
    %v298 = vadd.f32 %v235, %v277
    %v299 = vadd.f32 %v236, %v282
    %v300 = vadd.f32 %v237, %v287
    %v301 = vadd.f32 %v238, %v292
    %v302 = vmul.f32 %v252, 0.16666667
    %v303 = vmul.f32 %v257, 0.16666667
    %v304 = vmul.f32 %v262, 0.16666667
    %v305 = vmul.f32 %v267, 0.16666667
    %v306 = vmul.f32 %v272, 0.16666667
    %v307 = vmul.f32 %v277, 0.16666667
    %v308 = vmul.f32 %v282, 0.16666667
    %v309 = vmul.f32 %v287, 0.16666667
    %v310 = vmul.f32 %v292, 0.16666667
    %v311 = vmul.f32 %v302, %v35
    %v312 = vmul.f32 %v303, %v32
    %v313 = vadd.f32 %v311, %v312
    %v314 = vmul.f32 %v304, %v41
    %v315 = vadd.f32 %v313, %v314
    %v316 = vmul.f32 %v302, %v29
    %v317 = vmul.f32 %v303, %v46
    %v318 = vadd.f32 %v316, %v317
    %v319 = vmul.f32 %v304, %v44
    %v320 = vadd.f32 %v318, %v319
    %v321 = vmul.f32 %v302, %v23
    %v322 = vmul.f32 %v303, %v26
    %v323 = vadd.f32 %v321, %v322
    %v324 = vmul.f32 %v304, %v38
    %v325 = vadd.f32 %v323, %v324
    %v326 = vmul.f32 %v305, %v35
    %v327 = vmul.f32 %v306, %v32
    %v328 = vadd.f32 %v326, %v327
    %v329 = vmul.f32 %v307, %v41
    %v330 = vadd.f32 %v328, %v329
    %v331 = vmul.f32 %v305, %v29
    %v332 = vmul.f32 %v306, %v46
    %v333 = vadd.f32 %v331, %v332
    %v334 = vmul.f32 %v307, %v44
    %v335 = vadd.f32 %v333, %v334
    %v336 = vmul.f32 %v305, %v23
    %v337 = vmul.f32 %v306, %v26
    %v338 = vadd.f32 %v336, %v337
    %v339 = vmul.f32 %v307, %v38
    %v340 = vadd.f32 %v338, %v339
    %v341 = vmul.f32 %v308, %v35
    %v342 = vmul.f32 %v309, %v32
    %v343 = vadd.f32 %v341, %v342
    %v344 = vmul.f32 %v310, %v41
    %v345 = vadd.f32 %v343, %v344
    %v346 = vmul.f32 %v308, %v29
    %v347 = vmul.f32 %v309, %v46
    %v348 = vadd.f32 %v346, %v347
    %v349 = vmul.f32 %v310, %v44
    %v350 = vadd.f32 %v348, %v349
    %v351 = vmul.f32 %v308, %v23
    %v352 = vmul.f32 %v309, %v26
    %v353 = vadd.f32 %v351, %v352
    %v354 = vmul.f32 %v310, %v38
    %v355 = vadd.f32 %v353, %v354
    %v356 = vadd.f32 %v293, %v315
    %v357 = vadd.f32 %v294, %v320
    %v358 = vadd.f32 %v295, %v325
    %v359 = vadd.f32 %v296, %v330
    %v360 = vadd.f32 %v297, %v335
    %v361 = vadd.f32 %v298, %v340
    %v362 = vadd.f32 %v299, %v345
    %v363 = vadd.f32 %v300, %v350
    %v364 = vadd.f32 %v301, %v355
    %v365 = vmul.f32 %v315, 0.14285715
    %v366 = vmul.f32 %v320, 0.14285715
    %v367 = vmul.f32 %v325, 0.14285715
    %v368 = vmul.f32 %v330, 0.14285715
    %v369 = vmul.f32 %v335, 0.14285715
    %v370 = vmul.f32 %v340, 0.14285715
    %v371 = vmul.f32 %v345, 0.14285715
    %v372 = vmul.f32 %v350, 0.14285715
    %v373 = vmul.f32 %v355, 0.14285715
    %v374 = vmul.f32 %v365, %v35
    %v375 = vmul.f32 %v366, %v32
    %v376 = vadd.f32 %v374, %v375
    %v377 = vmul.f32 %v367, %v41
    %v378 = vadd.f32 %v376, %v377
    %v379 = vmul.f32 %v365, %v29
    %v380 = vmul.f32 %v366, %v46
    %v381 = vadd.f32 %v379, %v380
    %v382 = vmul.f32 %v367, %v44
    %v383 = vadd.f32 %v381, %v382
    %v384 = vmul.f32 %v365, %v23
    %v385 = vmul.f32 %v366, %v26
    %v386 = vadd.f32 %v384, %v385
    %v387 = vmul.f32 %v367, %v38
    %v388 = vadd.f32 %v386, %v387
    %v389 = vmul.f32 %v368, %v35
    %v390 = vmul.f32 %v369, %v32
    %v391 = vadd.f32 %v389, %v390
    %v392 = vmul.f32 %v370, %v41
    %v393 = vadd.f32 %v391, %v392
    %v394 = vmul.f32 %v368, %v29
    %v395 = vmul.f32 %v369, %v46
    %v396 = vadd.f32 %v394, %v395
    %v397 = vmul.f32 %v370, %v44
    %v398 = vadd.f32 %v396, %v397
    %v399 = vmul.f32 %v368, %v23
    %v400 = vmul.f32 %v369, %v26
    %v401 = vadd.f32 %v399, %v400
    %v402 = vmul.f32 %v370, %v38
    %v403 = vadd.f32 %v401, %v402
    %v404 = vmul.f32 %v371, %v35
    %v405 = vmul.f32 %v372, %v32
    %v406 = vadd.f32 %v404, %v405
    %v407 = vmul.f32 %v373, %v41
    %v408 = vadd.f32 %v406, %v407
    %v409 = vmul.f32 %v371, %v29
    %v410 = vmul.f32 %v372, %v46
    %v411 = vadd.f32 %v409, %v410
    %v412 = vmul.f32 %v373, %v44
    %v413 = vadd.f32 %v411, %v412
    %v414 = vmul.f32 %v371, %v23
    %v415 = vmul.f32 %v372, %v26
    %v416 = vadd.f32 %v414, %v415
    %v417 = vmul.f32 %v373, %v38
    %v418 = vadd.f32 %v416, %v417
    %v419 = vadd.f32 %v356, %v378
    %v420 = vadd.f32 %v357, %v383
    %v421 = vadd.f32 %v358, %v388
    %v422 = vadd.f32 %v359, %v393
    %v423 = vadd.f32 %v360, %v398
    %v424 = vadd.f32 %v361, %v403
    %v425 = vadd.f32 %v362, %v408
    %v426 = vadd.f32 %v363, %v413
    %v427 = vadd.f32 %v364, %v418
    %v428 = vmul.f32 %v378, 0.125
    %v429 = vmul.f32 %v383, 0.125
    %v430 = vmul.f32 %v388, 0.125
    %v431 = vmul.f32 %v393, 0.125
    %v432 = vmul.f32 %v398, 0.125
    %v433 = vmul.f32 %v403, 0.125
    %v434 = vmul.f32 %v408, 0.125
    %v435 = vmul.f32 %v413, 0.125
    %v436 = vmul.f32 %v418, 0.125
    %v437 = vmul.f32 %v428, %v35
    %v438 = vmul.f32 %v429, %v32
    %v439 = vadd.f32 %v437, %v438
    %v440 = vmul.f32 %v430, %v41
    %v441 = vadd.f32 %v439, %v440
    %v442 = vmul.f32 %v428, %v29
    %v443 = vmul.f32 %v429, %v46
    %v444 = vadd.f32 %v442, %v443
    %v445 = vmul.f32 %v430, %v44
    %v446 = vadd.f32 %v444, %v445
    %v447 = vmul.f32 %v428, %v23
    %v448 = vmul.f32 %v429, %v26
    %v449 = vadd.f32 %v447, %v448
    %v450 = vmul.f32 %v430, %v38
    %v451 = vadd.f32 %v449, %v450
    %v452 = vmul.f32 %v431, %v35
    %v453 = vmul.f32 %v432, %v32
    %v454 = vadd.f32 %v452, %v453
    %v455 = vmul.f32 %v433, %v41
    %v456 = vadd.f32 %v454, %v455
    %v457 = vmul.f32 %v431, %v29
    %v458 = vmul.f32 %v432, %v46
    %v459 = vadd.f32 %v457, %v458
    %v460 = vmul.f32 %v433, %v44
    %v461 = vadd.f32 %v459, %v460
    %v462 = vmul.f32 %v431, %v23
    %v463 = vmul.f32 %v432, %v26
    %v464 = vadd.f32 %v462, %v463
    %v465 = vmul.f32 %v433, %v38
    %v466 = vadd.f32 %v464, %v465
    %v467 = vmul.f32 %v434, %v35
    %v468 = vmul.f32 %v435, %v32
    %v469 = vadd.f32 %v467, %v468
    %v470 = vmul.f32 %v436, %v41
    %v471 = vadd.f32 %v469, %v470
    %v472 = vmul.f32 %v434, %v29
    %v473 = vmul.f32 %v435, %v46
    %v474 = vadd.f32 %v472, %v473
    %v475 = vmul.f32 %v436, %v44
    %v476 = vadd.f32 %v474, %v475
    %v477 = vmul.f32 %v434, %v23
    %v478 = vmul.f32 %v435, %v26
    %v479 = vadd.f32 %v477, %v478
    %v480 = vmul.f32 %v436, %v38
    %v481 = vadd.f32 %v479, %v480
    %v482 = vadd.f32 %v419, %v441
    %v483 = vadd.f32 %v420, %v446
    %v484 = vadd.f32 %v421, %v451
    %v485 = vadd.f32 %v422, %v456
    %v486 = vadd.f32 %v423, %v461
    %v487 = vadd.f32 %v424, %v466
    %v488 = vadd.f32 %v425, %v471
    %v489 = vadd.f32 %v426, %v476
    %v490 = vadd.f32 %v427, %v481
    %v491 = vmul.f32 %v441, 0.11111111
    %v492 = vmul.f32 %v446, 0.11111111
    %v493 = vmul.f32 %v451, 0.11111111
    %v494 = vmul.f32 %v456, 0.11111111
    %v495 = vmul.f32 %v461, 0.11111111
    %v496 = vmul.f32 %v466, 0.11111111
    %v497 = vmul.f32 %v471, 0.11111111
    %v498 = vmul.f32 %v476, 0.11111111
    %v499 = vmul.f32 %v481, 0.11111111
    %v500 = vmul.f32 %v491, %v35
    %v501 = vmul.f32 %v492, %v32
    %v502 = vadd.f32 %v500, %v501
    %v503 = vmul.f32 %v493, %v41
    %v504 = vadd.f32 %v502, %v503
    %v505 = vmul.f32 %v491, %v29
    %v506 = vmul.f32 %v492, %v46
    %v507 = vadd.f32 %v505, %v506
    %v508 = vmul.f32 %v493, %v44
    %v509 = vadd.f32 %v507, %v508
    %v510 = vmul.f32 %v491, %v23
    %v511 = vmul.f32 %v492, %v26
    %v512 = vadd.f32 %v510, %v511
    %v513 = vmul.f32 %v493, %v38
    %v514 = vadd.f32 %v512, %v513
    %v515 = vmul.f32 %v494, %v35
    %v516 = vmul.f32 %v495, %v32
    %v517 = vadd.f32 %v515, %v516
    %v518 = vmul.f32 %v496, %v41
    %v519 = vadd.f32 %v517, %v518
    %v520 = vmul.f32 %v494, %v29
    %v521 = vmul.f32 %v495, %v46
    %v522 = vadd.f32 %v520, %v521
    %v523 = vmul.f32 %v496, %v44
    %v524 = vadd.f32 %v522, %v523
    %v525 = vmul.f32 %v494, %v23
    %v526 = vmul.f32 %v495, %v26
    %v527 = vadd.f32 %v525, %v526
    %v528 = vmul.f32 %v496, %v38
    %v529 = vadd.f32 %v527, %v528
    %v530 = vmul.f32 %v497, %v35
    %v531 = vmul.f32 %v498, %v32
    %v532 = vadd.f32 %v530, %v531
    %v533 = vmul.f32 %v499, %v41
    %v534 = vadd.f32 %v532, %v533
    %v535 = vmul.f32 %v497, %v29
    %v536 = vmul.f32 %v498, %v46
    %v537 = vadd.f32 %v535, %v536
    %v538 = vmul.f32 %v499, %v44
    %v539 = vadd.f32 %v537, %v538
    %v540 = vmul.f32 %v497, %v23
    %v541 = vmul.f32 %v498, %v26
    %v542 = vadd.f32 %v540, %v541
    %v543 = vmul.f32 %v499, %v38
    %v544 = vadd.f32 %v542, %v543
    %v545 = vadd.f32 %v482, %v504
    %v546 = vadd.f32 %v483, %v509
    %v547 = vadd.f32 %v484, %v514
    %v548 = vadd.f32 %v485, %v519
    %v549 = vadd.f32 %v486, %v524
    %v550 = vadd.f32 %v487, %v529
    %v551 = vadd.f32 %v488, %v534
    %v552 = vadd.f32 %v489, %v539
    %v553 = vadd.f32 %v490, %v544
    %554 = vst [vmem:[#allocation5] sm:$0xff] %v545
    %s555 = scalar_lea.vmem [#allocation5], %s24
    %556 = vst [vmem:[%s555] sm:$0xff] %v546
    %s557 = scalar_lea.vmem [#allocation5], %s27
    %558 = vst [vmem:[%s557] sm:$0xff] %v547
    %s559 = scalar_lea.vmem [#allocation5], %s30
    %560 = vst [vmem:[%s559] sm:$0xff] %v548
    %s561 = scalar_lea.vmem [#allocation5], %s33
    %562 = vst [vmem:[%s561] sm:$0xff] %v549
    %s563 = scalar_lea.vmem [#allocation5], %s36
    %564 = vst [vmem:[%s563] sm:$0xff] %v550
    %s565 = scalar_lea.vmem [#allocation5], %s39
    %566 = vst [vmem:[%s565] sm:$0xff] %v551
    %s567 = scalar_lea.vmem [#allocation5], %s42
    %568 = vst [vmem:[%s567] sm:$0xff] %v552
    %s569 = sadd.s32 0, 64
    %s570 = scalar_lea.vmem [#allocation5], %s569
    %571 = vst [vmem:[%s570] sm:$0xff] %v553
    // Predicated region
    $region10: #{tpu_custom_call.1} parent=1 // pred_check
      _
    $region11: #{tpu_custom_call.1} parent=1 // pred_check_branch
      %573 = sbr.rel (0) target = $region13
    $region12: #{tpu_custom_call.1} parent=1 // pred_region
      %s575 = ssub.s32 1152, 1152
      %576 = vsyncadd [#allocation4], %s575
      %s577 = sshll.u32 [#allocation5], 4
      %s578 = int_to_ptr.vmem [resolvable:$true] %s577
      %583 = dma.vmem_to_hbm [thread:$0]  %s578, 1152, %s1, [#allocation4], 128, 128, 8
    $region13: #{tpu_custom_call.1} parent=1 // pred_fallthru
      _
    // Predicated region
    $region14: #{tpu_custom_call.1} parent=1 // pred_check
      _
    $region15: #{tpu_custom_call.1} parent=1 // pred_check_branch
      %585 = sbr.rel (0) target = $region17
    $region16: #{tpu_custom_call.1} parent=1 // pred_region
      %586 = dma.done [#allocation4], 1152
    $region17: #{tpu_custom_call.1} parent=1 // pred_fallthru
      _
    %587 = vsyncpa [#allocation3], 1
    %588 = vsyncpa [#allocation4], 1

</llo_original>
